<compile_context>
chip_gen: v7x
topology: tpu7x:2x2x1
jax: 0.10.0
libtpu: 0.0.40
codegen_flags: <defaults>
</compile_context>

<pallas_src>
import functools

import jax
import jax.numpy as jnp
import numpy as np
from jax.experimental import pallas as pl
from jax.experimental.pallas import tpu as pltpu

INPUT_SIZE = 2
HIDDEN = 20
OUTPUT_SIZE = 1
LATENT = 10

# Row offsets of each parameter block inside the packed slab.  Every section
# starts on a multiple of 8 so in-kernel static slices are sublane-aligned.
R_W1, R_B1 = 0, 8          # w1.T  (IN, H),  b1 (1, H)
R_W2, R_B2 = 16, 40        # generated fc2 weight.T (H, H), generated bias (1, H)
R_W3, R_B3 = 48, 72        # w3.T  (H, H),  b3 (1, H)
R_W4, R_B4 = 80, 104       # w4.T  (H, OUT) (cols padded), b4 (1, OUT) (cols padded)
SLAB_ROWS = 112
SLAB_COLS = HIDDEN


def net_kernel(x_ref, slab_ref, out_ref):
    f32 = jnp.float32
    x = x_ref[...]                                          # (block_b, IN)

    # ---- fc1 + ReLU ----
    w1t = slab_ref[R_W1:R_W1 + INPUT_SIZE, :]               # (IN, H)
    b1 = slab_ref[R_B1:R_B1 + 1, :]                         # (1, H)
    h1 = jnp.dot(x, w1t, preferred_element_type=f32) + b1
    h1 = jnp.maximum(h1, 0.0)

    # ---- HyperFC2 (weight.T / bias pre-generated from z in the JAX prologue) ----
    w2t = slab_ref[R_W2:R_W2 + HIDDEN, :]                   # (H, H)
    b2 = slab_ref[R_B2:R_B2 + 1, :]                         # (1, H)
    h2 = jnp.dot(h1, w2t, preferred_element_type=f32) + b2

    # ---- fc3 + LeakyReLU(0.1) ----
    w3t = slab_ref[R_W3:R_W3 + HIDDEN, :]                   # (H, H)
    b3 = slab_ref[R_B3:R_B3 + 1, :]                         # (1, H)
    h3 = jnp.dot(h2, w3t, preferred_element_type=f32) + b3
    h3 = jnp.where(h3 > 0, h3, 0.1 * h3)

    # ---- fc4 ----
    w4t = slab_ref[R_W4:R_W4 + HIDDEN, 0:OUTPUT_SIZE]       # (H, OUT)
    b4 = slab_ref[R_B4:R_B4 + 1, 0:OUTPUT_SIZE]             # (1, OUT)
    out_ref[...] = jnp.dot(h3, w4t, preferred_element_type=f32) + b4


def _pad_block(arr, nrows):
    r, c = arr.shape
    return jnp.pad(arr, ((0, nrows - r), (0, SLAB_COLS - c)))


def prepare_slab(p):
    """Parameter-only prologue (fused into the forward jit).

    Runs the HyperFC2 hypernetwork in plain JAX (it depends only on params,
    not on x) and packs every weight/bias into one aligned (112, 20) slab.
    """
    H, L = HIDDEN, LATENT
    z = p["z"]                                                     # (1, L)
    feat = jnp.concatenate(
        [jnp.sin(z), jnp.cos(z), jnp.sqrt(jnp.abs(z) + 1e-6)], axis=1)  # (1, 3L)
    hyper = feat @ p["proj_w"].T + p["proj_b"]                     # (1, H*H + H)
    w2t = hyper[0, :H * H].reshape(H, H).T                         # weight.T (H, H)
    b2 = hyper[0, H * H:].reshape(1, H)                            # (1, H)

    slab = jnp.concatenate([
        _pad_block(p["w1"].T, R_B1 - R_W1),
        _pad_block(p["b1"].reshape(1, H), R_W2 - R_B1),
        _pad_block(w2t, R_B2 - R_W2),
        _pad_block(b2, R_W3 - R_B2),
        _pad_block(p["w3"].T, R_B3 - R_W3),
        _pad_block(p["b3"].reshape(1, H), R_W4 - R_B3),
        _pad_block(p["w4"].T, R_B4 - R_W4),
        _pad_block(p["b4"].reshape(1, OUTPUT_SIZE), SLAB_ROWS - R_B4),
    ], axis=0)
    return slab.astype(jnp.float32)


def _round_up(n, m):
    return ((n + m - 1) // m) * m


@jax.jit
def net_forward(x, params):
    slab = prepare_slab(params)

    batch = x.shape[0]
    block_b = 256 if batch >= 256 else _round_up(batch, 8)
    padded = _round_up(batch, block_b)
    if padded != batch:
        x = jnp.pad(x, ((0, padded - batch), (0, 0)))

    out = pl.pallas_call(
        net_kernel,
        out_shape=jax.ShapeDtypeStruct((padded, OUTPUT_SIZE), jnp.float32),
        grid_spec=pltpu.PrefetchScalarGridSpec(
            num_scalar_prefetch=0,
            grid=(padded // block_b,),
            in_specs=[
                pl.BlockSpec((block_b, INPUT_SIZE), lambda i: (i, 0)),
                pl.BlockSpec((SLAB_ROWS, SLAB_COLS), lambda i: (0, 0)),
            ],
            out_specs=pl.BlockSpec((block_b, OUTPUT_SIZE), lambda i: (i, 0)),
        ),
        compiler_params=pltpu.CompilerParams(
            dimension_semantics=("parallel",)),
    )(x, slab)
    return out[:batch]


def init_params(key):
    ks = jax.random.split(key, 9)
    return dict(
        w1=jax.random.normal(ks[0], (HIDDEN, INPUT_SIZE), jnp.float32) * 0.5,
        b1=jax.random.normal(ks[1], (HIDDEN,), jnp.float32) * 0.1,
        z=jax.random.normal(ks[2], (1, LATENT), jnp.float32),
        proj_w=jax.random.normal(
            ks[3], (HIDDEN * HIDDEN + HIDDEN, 3 * LATENT), jnp.float32) * 0.1,
        proj_b=jax.random.normal(
            ks[4], (HIDDEN * HIDDEN + HIDDEN,), jnp.float32) * 0.1,
        w3=jax.random.normal(ks[5], (HIDDEN, HIDDEN), jnp.float32) * 0.2,
        b3=jax.random.normal(ks[6], (HIDDEN,), jnp.float32) * 0.1,
        w4=jax.random.normal(ks[7], (OUTPUT_SIZE, HIDDEN), jnp.float32) * 0.2,
        b4=jax.random.normal(ks[8], (OUTPUT_SIZE,), jnp.float32) * 0.1,
    )


def reference_forward(x, p):
    """Plain-JAX reference mirroring the PyTorch forward exactly."""
    h1 = jnp.maximum(x @ p["w1"].T + p["b1"], 0.0)
    z = p["z"]
    feat = jnp.concatenate(
        [jnp.sin(z), jnp.cos(z), jnp.sqrt(jnp.abs(z) + 1e-6)], axis=1)
    hyper = feat @ p["proj_w"].T + p["proj_b"]       # (1, H*H + H)
    H = HIDDEN
    weight = hyper[0, :H * H].reshape(H, H)
    bias = hyper[0, H * H:]
    h2 = h1 @ weight.T + bias
    h3 = h2 @ p["w3"].T + p["b3"]
    h3 = jnp.where(h3 > 0, h3, 0.1 * h3)
    return h3 @ p["w4"].T + p["b4"]


if __name__ == "__main__":
    key = jax.random.PRNGKey(0)
    k_x, k_p = jax.random.split(key)
    batch = 8
    x = jax.random.normal(k_x, (batch, INPUT_SIZE), jnp.float32)
    params = init_params(k_p)

    out = jax.block_until_ready(net_forward(x, params))
    ref = jax.block_until_ready(reference_forward(x, params))

    np.testing.assert_allclose(np.asarray(out), np.asarray(ref),
                               rtol=1e-4, atol=1e-4)
    print("KERNEL_OK")
</pallas_src>

<mosaic_0001>
module attributes {stable_mosaic.version = 11 : i64} {
  func.func @net_kernel(%arg0: i32, %arg1: memref<8x2xf32, #tpu.memory_space<vmem>>, %arg2: memref<112x20xf32, #tpu.memory_space<vmem>>, %arg3: memref<8x1xf32, #tpu.memory_space<vmem>>) attributes {dimension_semantics = [#tpu.dimension_semantics<parallel>], iteration_bounds = array<i64: 1>, scalar_prefetch = 0 : i64, scratch_operands = 0 : i64, tpu.core_type = #tpu.core_type<tc>, window_params = [{transform_indices = @transform_0, window_bounds = array<i64: 8, 2>}, {pipeline_mode = #tpu.pipeline_mode<synchronous>, transform_indices = @transform_1, window_bounds = array<i64: 112, 20>}, {transform_indices = @transform_2, window_bounds = array<i64: 8, 1>}]} {
    %c0 = arith.constant 0 : index
    %c0_0 = arith.constant 0 : index
    %0 = vector.load %arg1[%c0, %c0_0] : memref<8x2xf32, #tpu.memory_space<vmem>>, vector<8x2xf32>
    %c0_1 = arith.constant 0 : index
    %c0_2 = arith.constant 0 : index
    %1 = vector.load %arg2[%c0_1, %c0_2] : memref<112x20xf32, #tpu.memory_space<vmem>>, vector<2x20xf32>
    %c8 = arith.constant 8 : index
    %c0_3 = arith.constant 0 : index
    %2 = vector.load %arg2[%c8, %c0_3] : memref<112x20xf32, #tpu.memory_space<vmem>>, vector<1x20xf32>
    %cst = arith.constant dense<0.000000e+00> : vector<8x20xf32>
    %3 = tpu.matmul %0, %1, %cst {dimension_numbers = #tpu.dot_dimension_numbers<[1], [0], [0], [1], [0, 0, 1, 1], [], []>} : vector<8x2xf32>, vector<2x20xf32>, vector<8x20xf32> -> vector<8x20xf32>
    %4 = vector.broadcast %2 : vector<1x20xf32> to vector<8x20xf32>
    %5 = arith.addf %3, %4 : vector<8x20xf32>
    %cst_4 = arith.constant 0.000000e+00 : f32
    %6 = vector.broadcast %cst_4 : f32 to vector<8x20xf32>
    %7 = arith.maximumf %5, %6 : vector<8x20xf32>
    %c16 = arith.constant 16 : index
    %c0_5 = arith.constant 0 : index
    %8 = vector.load %arg2[%c16, %c0_5] : memref<112x20xf32, #tpu.memory_space<vmem>>, vector<20x20xf32>
    %c40 = arith.constant 40 : index
    %c0_6 = arith.constant 0 : index
    %9 = vector.load %arg2[%c40, %c0_6] : memref<112x20xf32, #tpu.memory_space<vmem>>, vector<1x20xf32>
    %cst_7 = arith.constant dense<0.000000e+00> : vector<8x20xf32>
    %10 = tpu.matmul %7, %8, %cst_7 {dimension_numbers = #tpu.dot_dimension_numbers<[1], [0], [0], [1], [0, 0, 1, 1], [], []>} : vector<8x20xf32>, vector<20x20xf32>, vector<8x20xf32> -> vector<8x20xf32>
    %11 = vector.broadcast %9 : vector<1x20xf32> to vector<8x20xf32>
    %12 = arith.addf %10, %11 : vector<8x20xf32>
    %c48 = arith.constant 48 : index
    %c0_8 = arith.constant 0 : index
    %13 = vector.load %arg2[%c48, %c0_8] : memref<112x20xf32, #tpu.memory_space<vmem>>, vector<20x20xf32>
    %c72 = arith.constant 72 : index
    %c0_9 = arith.constant 0 : index
    %14 = vector.load %arg2[%c72, %c0_9] : memref<112x20xf32, #tpu.memory_space<vmem>>, vector<1x20xf32>
    %cst_10 = arith.constant dense<0.000000e+00> : vector<8x20xf32>
    %15 = tpu.matmul %12, %13, %cst_10 {dimension_numbers = #tpu.dot_dimension_numbers<[1], [0], [0], [1], [0, 0, 1, 1], [], []>} : vector<8x20xf32>, vector<20x20xf32>, vector<8x20xf32> -> vector<8x20xf32>
    %16 = vector.broadcast %14 : vector<1x20xf32> to vector<8x20xf32>
    %17 = arith.addf %15, %16 : vector<8x20xf32>
    %cst_11 = arith.constant 0.000000e+00 : f32
    %18 = vector.broadcast %cst_11 : f32 to vector<8x20xf32>
    %19 = arith.cmpf ogt, %17, %18 : vector<8x20xf32>
    %cst_12 = arith.constant 1.000000e-01 : f32
    %20 = vector.broadcast %cst_12 : f32 to vector<8x20xf32>
    %21 = arith.mulf %20, %17 : vector<8x20xf32>
    %22 = arith.select %19, %17, %21 : vector<8x20xi1>, vector<8x20xf32>
    %c80 = arith.constant 80 : index
    %c0_13 = arith.constant 0 : index
    %23 = vector.load %arg2[%c80, %c0_13] : memref<112x20xf32, #tpu.memory_space<vmem>>, vector<20x1xf32>
    %c104 = arith.constant 104 : index
    %c0_14 = arith.constant 0 : index
    %24 = vector.load %arg2[%c104, %c0_14] : memref<112x20xf32, #tpu.memory_space<vmem>>, vector<1x1xf32>
    %cst_15 = arith.constant dense<0.000000e+00> : vector<8x1xf32>
    %25 = tpu.matmul %22, %23, %cst_15 {dimension_numbers = #tpu.dot_dimension_numbers<[1], [0], [0], [1], [0, 0, 1, 1], [], []>} : vector<8x20xf32>, vector<20x1xf32>, vector<8x1xf32> -> vector<8x1xf32>
    %26 = vector.broadcast %24 : vector<1x1xf32> to vector<8x1xf32>
    %27 = arith.addf %25, %26 : vector<8x1xf32>
    %c0_16 = arith.constant 0 : index
    %c0_17 = arith.constant 0 : index
    %28 = vector.load %arg3[%c0_16, %c0_17] : memref<8x1xf32, #tpu.memory_space<vmem>>, vector<8x1xf32>
    tpu.vector_store %arg3[%c0_16, %c0_17], %27 {strides = array<i32>} : memref<8x1xf32, #tpu.memory_space<vmem>>, vector<8x1xf32>,
    return
  }
  func.func @transform_0(%arg0: i32) -> (i32, i32) {
    %c0_i32 = arith.constant 0 : i32
    %c0_i32_0 = arith.constant 0 : i32
    return %arg0, %c0_i32 : i32, i32
  }
  func.func @transform_1(%arg0: i32) -> (i32, i32) {
    %c0_i32 = arith.constant 0 : i32
    %c0_i32_0 = arith.constant 0 : i32
    %c0_i32_1 = arith.constant 0 : i32
    return %c0_i32, %c0_i32_0 : i32, i32
  }
  func.func @transform_2(%arg0: i32) -> (i32, i32) {
    %c0_i32 = arith.constant 0 : i32
    %c0_i32_0 = arith.constant 0 : i32
    return %arg0, %c0_i32 : i32, i32
  }
}

</mosaic_0001>

<llo_original>
// kernel: squeeze.1
$region0: #{squeeze.1}
  %s0 = inlined_call_operand.vmem [shape: f32[400], index: 0, kind: input, shape index: {}]
  %s1 = inlined_call_operand.vmem [shape: f32[20,20], index: 1, kind: output, shape index: {}]
  $region1: #{squeeze.1} parent=0
    #allocation0 [shape = 'u8[4096]{0}', space=vmem, size = 0x1000, scoped, tag = 'scoped mem for input reshape']
    %s3 = sshllo.u32 0, 4
    %v4 = vld [vmem:[%s0] sm:%s3]
    %5 = vst [vmem:[#allocation0] sm:%s3] %v4
    %v6 = vld [vmem:[#allocation0] sm:$0x1]
    %vm7 = vcmask 162816
    %8 = vst.msk [vmem:[%s1] sm:$0x1] %vm7, %v6
    %s9 = scalar_lea.vmem [#allocation0], 2
    %v10 = vld [vmem:[%s9] sm:$0x1]
    %11 = vrot.lane.b32.xlu0 %v10, 124
    %v12 = vpop.permute.xlu0 %11
    %vm13 = vcmask 162816
    %s14 = scalar_lea.vmem %s1, 13
    %15 = vst.msk [vmem:[%s14] sm:$0x1] %vm13, %v12
    %s16 = scalar_lea.vmem [#allocation0], 1
    %v17 = vld [vmem:[%s16] sm:$0x1]
    %18 = vrot.lane.b32.xlu0 %v17, 116
    %v19 = vpop.permute.xlu0 %18
    %vm20 = vcmask 162816
    %s21 = scalar_lea.vmem %s1, 7
    %22 = vst.msk [vmem:[%s21] sm:$0x1] %vm20, %v19
    %v23 = vld [vmem:[#allocation0] sm:$0x1]
    %24 = vrot.lane.b32.xlu0 %v23, 108
    %v25 = vpop.permute.xlu0 %24
    %vm26 = vcmask 162816
    %s27 = scalar_lea.vmem %s1, 1
    %28 = vst.msk [vmem:[%s27] sm:$0x1] %vm26, %v25
    %s29 = scalar_lea.vmem [#allocation0], 2
    %v30 = vld [vmem:[%s29] sm:$0x1]
    %31 = vrot.lane.b32.xlu0 %v30, 104
    %v32 = vpop.permute.xlu0 %31
    %vm33 = vcmask 162816
    %s34 = scalar_lea.vmem %s1, 14
    %35 = vst.msk [vmem:[%s34] sm:$0x1] %vm33, %v32
    %s36 = scalar_lea.vmem [#allocation0], 1
    %v37 = vld [vmem:[%s36] sm:$0x1]
    %38 = vrot.lane.b32.xlu0 %v37, 96
    %v39 = vpop.permute.xlu0 %38
    %vm40 = vcmask 162816
    %s41 = scalar_lea.vmem %s1, 8
    %42 = vst.msk [vmem:[%s41] sm:$0x1] %vm40, %v39
    %v43 = vld [vmem:[#allocation0] sm:$0x1]
    %44 = vrot.lane.b32.xlu0 %v43, 88
    %v45 = vpop.permute.xlu0 %44
    %vm46 = vcmask 162816
    %s47 = scalar_lea.vmem %s1, 2
    %48 = vst.msk [vmem:[%s47] sm:$0x1] %vm46, %v45
    %s49 = scalar_lea.vmem [#allocation0], 2
    %v50 = vld [vmem:[%s49] sm:$0x1]
    %51 = vrot.lane.b32.xlu0 %v50, 84
    %v52 = vpop.permute.xlu0 %51
    %vm53 = vcmask 162816
    %s54 = scalar_lea.vmem %s1, 15
    %55 = vst.msk [vmem:[%s54] sm:$0x1] %vm53, %v52
    %s56 = scalar_lea.vmem [#allocation0], 1
    %v57 = vld [vmem:[%s56] sm:$0x1]
    %58 = vrot.lane.b32.xlu0 %v57, 76
    %v59 = vpop.permute.xlu0 %58
    %vm60 = vcmask 162816
    %s61 = scalar_lea.vmem %s1, 9
    %62 = vst.msk [vmem:[%s61] sm:$0x1] %vm60, %v59
    %v63 = vld [vmem:[#allocation0] sm:$0x1]
    %64 = vrot.lane.b32.xlu0 %v63, 68
    %v65 = vpop.permute.xlu0 %64
    %vm66 = vcmask 162816
    %s67 = scalar_lea.vmem %s1, 3
    %68 = vst.msk [vmem:[%s67] sm:$0x1] %vm66, %v65
    %s69 = scalar_lea.vmem [#allocation0], 2
    %v70 = vld [vmem:[%s69] sm:$0x1]
    %71 = vrot.lane.b32.xlu0 %v70, 64
    %v72 = vpop.permute.xlu0 %71
    %vm73 = vcmask 162816
    %s74 = scalar_lea.vmem %s1, 16
    %75 = vst.msk [vmem:[%s74] sm:$0x1] %vm73, %v72
    %s76 = scalar_lea.vmem [#allocation0], 1
    %v77 = vld [vmem:[%s76] sm:$0x1]
    %78 = vrot.lane.b32.xlu0 %v77, 56
    %v79 = vpop.permute.xlu0 %78
    %vm80 = vcmask 162816
    %s81 = scalar_lea.vmem %s1, 10
    %82 = vst.msk [vmem:[%s81] sm:$0x1] %vm80, %v79
    %v83 = vld [vmem:[#allocation0] sm:$0x1]
    %84 = vrot.lane.b32.xlu0 %v83, 48
    %v85 = vpop.permute.xlu0 %84
    %vm86 = vcmask 162816
    %s87 = scalar_lea.vmem %s1, 4
    %88 = vst.msk [vmem:[%s87] sm:$0x1] %vm86, %v85
    %s89 = scalar_lea.vmem [#allocation0], 2
    %v90 = vld [vmem:[%s89] sm:$0x1]
    %91 = vrot.lane.b32.xlu0 %v90, 44
    %v92 = vpop.permute.xlu0 %91
    %vm93 = vcmask 162816
    %s94 = scalar_lea.vmem %s1, 17
    %95 = vst.msk [vmem:[%s94] sm:$0x1] %vm93, %v92
    %s96 = scalar_lea.vmem [#allocation0], 1
    %v97 = vld [vmem:[%s96] sm:$0x1]
    %98 = vrot.lane.b32.xlu0 %v97, 36
    %v99 = vpop.permute.xlu0 %98
    %vm100 = vcmask 162816
    %s101 = scalar_lea.vmem %s1, 11
    %102 = vst.msk [vmem:[%s101] sm:$0x1] %vm100, %v99
    %v103 = vld [vmem:[#allocation0] sm:$0x1]
    %104 = vrot.lane.b32.xlu0 %v103, 28
    %v105 = vpop.permute.xlu0 %104
    %vm106 = vcmask 162816
    %s107 = scalar_lea.vmem %s1, 5
    %108 = vst.msk [vmem:[%s107] sm:$0x1] %vm106, %v105
    %s109 = scalar_lea.vmem [#allocation0], 2
    %v110 = vld [vmem:[%s109] sm:$0x1]
    %111 = vrot.lane.b32.xlu0 %v110, 24
    %v112 = vpop.permute.xlu0 %111
    %vm113 = vcmask 162816
    %s114 = scalar_lea.vmem %s1, 18
    %115 = vst.msk [vmem:[%s114] sm:$0x1] %vm113, %v112
    %s116 = scalar_lea.vmem [#allocation0], 1
    %v117 = vld [vmem:[%s116] sm:$0x1]
    %s118 = scalar_lea.vmem [#allocation0], 2
    %v119 = vld [vmem:[%s118] sm:$0x1]
    %vm120 = vcmask 916480
    %v121 = vsel %vm120, %v119, %v117
    %122 = vrot.lane.b32.xlu0 %v121, 16
    %v123 = vpop.permute.xlu0 %122
    %vm124 = vcmask 130048
    %s125 = scalar_lea.vmem %s1, 12
    %126 = vst.msk [vmem:[%s125] sm:$0x1] %vm124, %v123
    %vm127 = vcmask 162944
    %s128 = scalar_lea.vmem %s1, 12
    %129 = vst.msk [vmem:[%s128] sm:$0x1] %vm127, %v123
    %v130 = vld [vmem:[#allocation0] sm:$0x1]
    %s131 = scalar_lea.vmem [#allocation0], 1
    %v132 = vld [vmem:[%s131] sm:$0x1]
    %vm133 = vcmask 982016
    %v134 = vsel %vm133, %v132, %v130
    %135 = vrot.lane.b32.xlu0 %v134, 8
    %v136 = vpop.permute.xlu0 %135
    %vm137 = vcmask 64512
    %s138 = scalar_lea.vmem %s1, 6
    %139 = vst.msk [vmem:[%s138] sm:$0x1] %vm137, %v136
    %vm140 = vcmask 162880
    %s141 = scalar_lea.vmem %s1, 6
    %142 = vst.msk [vmem:[%s141] sm:$0x1] %vm140, %v136
    %s143 = scalar_lea.vmem [#allocation0], 2
    %v144 = vld [vmem:[%s143] sm:$0x1]
    %s145 = scalar_lea.vmem [#allocation0], 3
    %v146 = vld [vmem:[%s145] sm:$0x1]
    %vm147 = vcmask 1014784
    %v148 = vsel %vm147, %v146, %v144
    %149 = vrot.lane.b32.xlu0 %v148, 4
    %v150 = vpop.permute.xlu0 %149
    %vm151 = vcmask 31744
    %s152 = scalar_lea.vmem %s1, 19
    %153 = vst.msk [vmem:[%s152] sm:$0x1] %vm151, %v150
    %vm154 = vcmask 162848
    %s155 = scalar_lea.vmem %s1, 19
    %156 = vst.msk [vmem:[%s155] sm:$0x1] %vm154, %v150

// kernel: net_forward.1
$region0: #{net_forward.1}
  #allocation0 [shape = 'u32[]', space=smem, size = 0x4, offset = 0x4, fixed_abs, tag = 'smem constant byte address 0x4 - core index']
  #allocation1 [shape = 'u32[144,128]{1,0:T(1,128)}', space=vmem, size = 0x12000, scoped, tag = 'internal scratch']
  %s0 = inlined_call_operand.vmem [shape: f32[8,2], index: 0, kind: input, shape index: {}]
  %s1 = inlined_call_operand.vmem [shape: f32[112,20], index: 1, kind: input, shape index: {}]
  %s2 = inlined_call_operand.vmem [shape: f32[8,1], index: 2, kind: output, shape index: {}]
  %s3 = sld [smem:[#allocation0]]
  $region18: #{net_forward.1} parent=0
    _
  %s5 = ssub.s32 1, %s3
  %s6 = scalar_select 0, %s5, %s3
  // Predicated region
  $region2: #{net_forward.1} parent=0 // pred_check
    _
  $region3: #{net_forward.1} parent=0 // pred_check_branch
    %8 = sbr.rel (0) target = $region5
  $region4: #{net_forward.1} parent=0 // pred_region
    _
  $region5: #{net_forward.1} parent=0 // pred_fallthru
    _
  // Predicated region
  $region6: #{net_forward.1} parent=0 // pred_check
    _
  $region7: #{net_forward.1} parent=0 // pred_check_branch
    %10 = sbr.rel (0) target = $region9
  $region8: #{net_forward.1} parent=0 // pred_region
    _
  $region9: #{net_forward.1} parent=0 // pred_fallthru
    _
  %v11 = vld [vmem:[%s0] sm:$0xff]
  %v12 = vld [vmem:[%s1] sm:$0x3]
  %v13 = vld [vmem:[%s1 + $0x8] sm:$0x1]
  %v14 = vlaneseq
  %v15 = vshrl.u32 %v14, 7
  %v16 = vsub.s32 0, %v15
  %v17 = vrot.slane %v13, %v16
  %vm18 = vcmask 15360
  %v20 = vsel %vm18, %v11, 0
  %vm22 = vcmask 1041408
  %v24 = vsel %vm22, %v12, 0
  %26 = vmatprep.subr.mxu0 0.0
  %27 = vmatpush1.msra.mxu0 %v24
  %28 = vmatprep.subr.mxu0 0.0
  %29 = vmatpush1.msra.mxu0 0.0
  %30 = vmatprep.subr.mxu0 0.0
  %31 = vmatpush1.msra.mxu0 0.0
  %32 = vmatprep.subr.mxu0 0.0
  %33 = vmatpush1.msra.mxu0 0.0
  %34 = vmatprep.subr.mxu0 0.0
  %35 = vmatpush1.msra.mxu0 0.0
  %36 = vmatprep.subr.mxu0 0.0
  %37 = vmatpush1.msra.mxu0 0.0
  %38 = vmatprep.subr.mxu0 0.0
  %39 = vmatpush1.msra.mxu0 0.0
  %40 = vmatprep.subr.mxu0 0.0
  %41 = vmatpush1.msra.mxu0 0.0
  %42 = vmatprep.subr.mxu0 0.0
  %43 = vmatpush1.msra.mxu0 0.0
  %44 = vmatprep.subr.mxu0 0.0
  %45 = vmatpush1.msra.mxu0 0.0
  %46 = vmatprep.subr.mxu0 0.0
  %47 = vmatpush1.msra.mxu0 0.0
  %48 = vmatprep.subr.mxu0 0.0
  %49 = vmatpush1.msra.mxu0 0.0
  %50 = vmatprep.subr.mxu0 0.0
  %51 = vmatpush1.msra.mxu0 0.0
  %52 = vmatprep.subr.mxu0 0.0
  %53 = vmatpush1.msra.mxu0 0.0
  %54 = vmatprep.subr.mxu0 0.0
  %55 = vmatpush1.msra.mxu0 0.0
  %56 = vmatprep.subr.mxu0 0.0
  %57 = vmatpush1.msra.mxu0 0.0
  %58 = vmatprep.subr.mxu0 0.0
  %59 = vmatpush1.msra.mxu0 0.0
  %60 = vmatprep.subr.mxu0 0.0
  %61 = vmatpush1.msra.mxu0 0.0
  %62 = vmatprep.subr.mxu0 0.0
  %63 = vmatpush1.msra.mxu0 0.0
  %64 = vmatprep.subr.mxu0 0.0
  %65 = vmatpush1.msra.mxu0 0.0
  %66 = vmatprep.subr.mxu0 0.0
  %67 = vmatpush1.msra.mxu0 0.0
  %68 = vmatprep.subr.mxu0 0.0
  %69 = vmatpush1.msra.mxu0 0.0
  %70 = vmatprep.subr.mxu0 0.0
  %71 = vmatpush1.msra.mxu0 0.0
  %72 = vmatprep.subr.mxu0 0.0
  %73 = vmatpush1.msra.mxu0 0.0
  %74 = vmatprep.subr.mxu0 0.0
  %75 = vmatpush1.msra.mxu0 0.0
  %76 = vmatprep.subr.mxu0 0.0
  %77 = vmatpush1.msra.mxu0 0.0
  %78 = vmatprep.subr.mxu0 0.0
  %79 = vmatpush1.msra.mxu0 0.0
  %80 = vmatprep.subr.mxu0 0.0
  %81 = vmatpush1.msra.mxu0 0.0
  %82 = vmatprep.subr.mxu0 0.0
  %83 = vmatpush1.msra.mxu0 0.0
  %84 = vmatprep.subr.mxu0 0.0
  %85 = vmatpush1.msra.mxu0 0.0
  %86 = vmatprep.subr.mxu0 0.0
  %87 = vmatpush1.msra.mxu0 0.0
  %88 = vmatprep.subr.mxu0 0.0
  %89 = vmatpush1.msra.mxu0 0.0
  %90 = vmatprep.mubr.f32.mxu0 0.0
  %91 = vmatmul.mubr.f32.gmra.mrb[0].mxu0 %v20
  %v92 = vpop.f32.mrb[0].mxu0
  %v93 = vadd.f32 %v17, %v92
  %v94 = vpop.f32.mrb[0].mxu0
  %95 = vdwg.mxu0
  %v96 = vmax.f32 %v93, 0.0
  %v97 = vld [vmem:[%s1 + $0x10] sm:$0xff]
  %v98 = vld [vmem:[%s1 + $0x18] sm:$0xff]
  %v99 = vld [vmem:[%s1 + $0x20] sm:$0xf]
  %v100 = vld [vmem:[%s1 + $0x28] sm:$0x1]
  %v101 = vlaneseq
  %v102 = vshrl.u32 %v101, 7
  %v103 = vsub.s32 0, %v102
  %v104 = vrot.slane %v100, %v103
  %vm105 = vcmask 162816
  %v107 = vsel %vm105, %v96, 0
  %vm109 = vcmask 1043456
  %v111 = vsel %vm109, %v99, 0
  %113 = vmatprep.subr.mxu0 0.0
  %114 = vmatpush1.msra.mxu0 %v97
  %115 = vmatprep.subr.mxu0 0.0
  %116 = vmatpush1.msra.mxu0 %v98
  %117 = vmatprep.subr.mxu0 0.0
  %118 = vmatpush1.msra.mxu0 %v111
  %119 = vmatprep.subr.mxu0 0.0
  %120 = vmatpush1.msra.mxu0 0.0
  %121 = vmatprep.subr.mxu0 0.0
  %122 = vmatpush1.msra.mxu0 0.0
  %123 = vmatprep.subr.mxu0 0.0
  %124 = vmatpush1.msra.mxu0 0.0
  %125 = vmatprep.subr.mxu0 0.0
  %126 = vmatpush1.msra.mxu0 0.0
  %127 = vmatprep.subr.mxu0 0.0
  %128 = vmatpush1.msra.mxu0 0.0
  %129 = vmatprep.subr.mxu0 0.0
  %130 = vmatpush1.msra.mxu0 0.0
  %131 = vmatprep.subr.mxu0 0.0
  %132 = vmatpush1.msra.mxu0 0.0
  %133 = vmatprep.subr.mxu0 0.0
  %134 = vmatpush1.msra.mxu0 0.0
  %135 = vmatprep.subr.mxu0 0.0
  %136 = vmatpush1.msra.mxu0 0.0
  %137 = vmatprep.subr.mxu0 0.0
  %138 = vmatpush1.msra.mxu0 0.0
  %139 = vmatprep.subr.mxu0 0.0
  %140 = vmatpush1.msra.mxu0 0.0
  %141 = vmatprep.subr.mxu0 0.0
  %142 = vmatpush1.msra.mxu0 0.0
  %143 = vmatprep.subr.mxu0 0.0
  %144 = vmatpush1.msra.mxu0 0.0
  %145 = vmatprep.subr.mxu0 0.0
  %146 = vmatpush1.msra.mxu0 0.0
  %147 = vmatprep.subr.mxu0 0.0
  %148 = vmatpush1.msra.mxu0 0.0
  %149 = vmatprep.subr.mxu0 0.0
  %150 = vmatpush1.msra.mxu0 0.0
  %151 = vmatprep.subr.mxu0 0.0
  %152 = vmatpush1.msra.mxu0 0.0
  %153 = vmatprep.subr.mxu0 0.0
  %154 = vmatpush1.msra.mxu0 0.0
  %155 = vmatprep.subr.mxu0 0.0
  %156 = vmatpush1.msra.mxu0 0.0
  %157 = vmatprep.subr.mxu0 0.0
  %158 = vmatpush1.msra.mxu0 0.0
  %159 = vmatprep.subr.mxu0 0.0
  %160 = vmatpush1.msra.mxu0 0.0
  %161 = vmatprep.subr.mxu0 0.0
  %162 = vmatpush1.msra.mxu0 0.0
  %163 = vmatprep.subr.mxu0 0.0
  %164 = vmatpush1.msra.mxu0 0.0
  %165 = vmatprep.subr.mxu0 0.0
  %166 = vmatpush1.msra.mxu0 0.0
  %167 = vmatprep.subr.mxu0 0.0
  %168 = vmatpush1.msra.mxu0 0.0
  %169 = vmatprep.subr.mxu0 0.0
  %170 = vmatpush1.msra.mxu0 0.0
  %171 = vmatprep.subr.mxu0 0.0
  %172 = vmatpush1.msra.mxu0 0.0
  %173 = vmatprep.subr.mxu0 0.0
  %174 = vmatpush1.msra.mxu0 0.0
  %175 = vmatprep.subr.mxu0 0.0
  %176 = vmatpush1.msra.mxu0 0.0
  %177 = vmatprep.mubr.f32.mxu0 0.0
  %178 = vmatmul.mubr.f32.gmra.mrb[0].mxu0 %v107
  %v179 = vpop.f32.mrb[0].mxu0
  %v180 = vadd.f32 %v104, %v179
  %v181 = vpop.f32.mrb[0].mxu0
  %182 = vdwg.mxu0
  %v183 = vld [vmem:[%s1 + $0x30] sm:$0xff]
  %v184 = vld [vmem:[%s1 + $0x38] sm:$0xff]
  %v185 = vld [vmem:[%s1 + $0x40] sm:$0xf]
  %v186 = vld [vmem:[%s1 + $0x48] sm:$0x1]
  %v187 = vlaneseq
  %v188 = vshrl.u32 %v187, 7
  %v189 = vsub.s32 0, %v188
  %v190 = vrot.slane %v186, %v189
  %v192 = vsel %vm105, %v180, 0
  %v195 = vsel %vm109, %v185, 0
  %197 = vmatprep.subr.mxu0 0.0
  %198 = vmatpush1.msra.mxu0 %v183
  %199 = vmatprep.subr.mxu0 0.0
  %200 = vmatpush1.msra.mxu0 %v184
  %201 = vmatprep.subr.mxu0 0.0
  %202 = vmatpush1.msra.mxu0 %v195
  %203 = vmatprep.subr.mxu0 0.0
  %204 = vmatpush1.msra.mxu0 0.0
  %205 = vmatprep.subr.mxu0 0.0
  %206 = vmatpush1.msra.mxu0 0.0
  %207 = vmatprep.subr.mxu0 0.0
  %208 = vmatpush1.msra.mxu0 0.0
  %209 = vmatprep.subr.mxu0 0.0
  %210 = vmatpush1.msra.mxu0 0.0
  %211 = vmatprep.subr.mxu0 0.0
  %212 = vmatpush1.msra.mxu0 0.0
  %213 = vmatprep.subr.mxu0 0.0
  %214 = vmatpush1.msra.mxu0 0.0
  %215 = vmatprep.subr.mxu0 0.0
  %216 = vmatpush1.msra.mxu0 0.0
  %217 = vmatprep.subr.mxu0 0.0
  %218 = vmatpush1.msra.mxu0 0.0
  %219 = vmatprep.subr.mxu0 0.0
  %220 = vmatpush1.msra.mxu0 0.0
  %221 = vmatprep.subr.mxu0 0.0
  %222 = vmatpush1.msra.mxu0 0.0
  %223 = vmatprep.subr.mxu0 0.0
  %224 = vmatpush1.msra.mxu0 0.0
  %225 = vmatprep.subr.mxu0 0.0
  %226 = vmatpush1.msra.mxu0 0.0
  %227 = vmatprep.subr.mxu0 0.0
  %228 = vmatpush1.msra.mxu0 0.0
  %229 = vmatprep.subr.mxu0 0.0
  %230 = vmatpush1.msra.mxu0 0.0
  %231 = vmatprep.subr.mxu0 0.0
  %232 = vmatpush1.msra.mxu0 0.0
  %233 = vmatprep.subr.mxu0 0.0
  %234 = vmatpush1.msra.mxu0 0.0
  %235 = vmatprep.subr.mxu0 0.0
  %236 = vmatpush1.msra.mxu0 0.0
  %237 = vmatprep.subr.mxu0 0.0
  %238 = vmatpush1.msra.mxu0 0.0
  %239 = vmatprep.subr.mxu0 0.0
  %240 = vmatpush1.msra.mxu0 0.0
  %241 = vmatprep.subr.mxu0 0.0
  %242 = vmatpush1.msra.mxu0 0.0
  %243 = vmatprep.subr.mxu0 0.0
  %244 = vmatpush1.msra.mxu0 0.0
  %245 = vmatprep.subr.mxu0 0.0
  %246 = vmatpush1.msra.mxu0 0.0
  %247 = vmatprep.subr.mxu0 0.0
  %248 = vmatpush1.msra.mxu0 0.0
  %249 = vmatprep.subr.mxu0 0.0
  %250 = vmatpush1.msra.mxu0 0.0
  %251 = vmatprep.subr.mxu0 0.0
  %252 = vmatpush1.msra.mxu0 0.0
  %253 = vmatprep.subr.mxu0 0.0
  %254 = vmatpush1.msra.mxu0 0.0
  %255 = vmatprep.subr.mxu0 0.0
  %256 = vmatpush1.msra.mxu0 0.0
  %257 = vmatprep.subr.mxu0 0.0
  %258 = vmatpush1.msra.mxu0 0.0
  %259 = vmatprep.subr.mxu0 0.0
  %260 = vmatpush1.msra.mxu0 0.0
  %261 = vmatprep.mubr.f32.mxu0 0.0
  %262 = vmatmul.mubr.f32.gmra.mrb[0].mxu0 %v192
  %v263 = vpop.f32.mrb[0].mxu0
  %v264 = vadd.f32 %v190, %v263
  %v265 = vpop.f32.mrb[0].mxu0
  %266 = vdwg.mxu0
  %vm267 = vcmp.gt.f32.partialorder %v264, 0.0
  %v268 = vmul.f32 %v264, 0.1
  %v269 = vsel %vm267, %v264, %v268
  %v270 = vld [vmem:[%s1 + $0x50] sm:$0xff]
  %v271 = vld [vmem:[%s1 + $0x58] sm:$0xff]
  %v272 = vld [vmem:[%s1 + $0x60] sm:$0xf]
  %v273 = vld [vmem:[%s1 + $0x68] sm:$0x1]
  %v274 = vlaneseq
  %v275 = vshrl.u32 %v274, 7
  %v276 = vsub.s32 0, %v275
  %v277 = vrot.slane %v273, %v276
  %v279 = vsel %vm105, %v269, 0
  %v282 = vsel %vm109, %v272, 0
  %284 = vmatprep.subr.mxu0 0.0
  %285 = vmatpush1.msra.mxu0 %v270
  %286 = vmatprep.subr.mxu0 0.0
  %287 = vmatpush1.msra.mxu0 %v271
  %288 = vmatprep.subr.mxu0 0.0
  %289 = vmatpush1.msra.mxu0 %v282
  %290 = vmatprep.subr.mxu0 0.0
  %291 = vmatpush1.msra.mxu0 0.0
  %292 = vmatprep.subr.mxu0 0.0
  %293 = vmatpush1.msra.mxu0 0.0
  %294 = vmatprep.subr.mxu0 0.0
  %295 = vmatpush1.msra.mxu0 0.0
  %296 = vmatprep.subr.mxu0 0.0
  %297 = vmatpush1.msra.mxu0 0.0
  %298 = vmatprep.subr.mxu0 0.0
  %299 = vmatpush1.msra.mxu0 0.0
  %300 = vmatprep.subr.mxu0 0.0
  %301 = vmatpush1.msra.mxu0 0.0
  %302 = vmatprep.subr.mxu0 0.0
  %303 = vmatpush1.msra.mxu0 0.0
  %304 = vmatprep.subr.mxu0 0.0
  %305 = vmatpush1.msra.mxu0 0.0
  %306 = vmatprep.subr.mxu0 0.0
  %307 = vmatpush1.msra.mxu0 0.0
  %308 = vmatprep.subr.mxu0 0.0
  %309 = vmatpush1.msra.mxu0 0.0
  %310 = vmatprep.subr.mxu0 0.0
  %311 = vmatpush1.msra.mxu0 0.0
  %312 = vmatprep.subr.mxu0 0.0
  %313 = vmatpush1.msra.mxu0 0.0
  %314 = vmatprep.subr.mxu0 0.0
  %315 = vmatpush1.msra.mxu0 0.0
  %316 = vmatprep.subr.mxu0 0.0
  %317 = vmatpush1.msra.mxu0 0.0
  %318 = vmatprep.subr.mxu0 0.0
  %319 = vmatpush1.msra.mxu0 0.0
  %320 = vmatprep.subr.mxu0 0.0
  %321 = vmatpush1.msra.mxu0 0.0
  %322 = vmatprep.subr.mxu0 0.0
  %323 = vmatpush1.msra.mxu0 0.0
  %324 = vmatprep.subr.mxu0 0.0
  %325 = vmatpush1.msra.mxu0 0.0
  %326 = vmatprep.subr.mxu0 0.0
  %327 = vmatpush1.msra.mxu0 0.0
  %328 = vmatprep.subr.mxu0 0.0
  %329 = vmatpush1.msra.mxu0 0.0
  %330 = vmatprep.subr.mxu0 0.0
  %331 = vmatpush1.msra.mxu0 0.0
  %332 = vmatprep.subr.mxu0 0.0
  %333 = vmatpush1.msra.mxu0 0.0
  %334 = vmatprep.subr.mxu0 0.0
  %335 = vmatpush1.msra.mxu0 0.0
  %336 = vmatprep.subr.mxu0 0.0
  %337 = vmatpush1.msra.mxu0 0.0
  %338 = vmatprep.subr.mxu0 0.0
  %339 = vmatpush1.msra.mxu0 0.0
  %340 = vmatprep.subr.mxu0 0.0
  %341 = vmatpush1.msra.mxu0 0.0
  %342 = vmatprep.subr.mxu0 0.0
  %343 = vmatpush1.msra.mxu0 0.0
  %344 = vmatprep.subr.mxu0 0.0
  %345 = vmatpush1.msra.mxu0 0.0
  %346 = vmatprep.subr.mxu0 0.0
  %347 = vmatpush1.msra.mxu0 0.0
  %348 = vmatprep.mubr.f32.mxu0 0.0
  %349 = vmatmul.mubr.f32.gmra.mrb[0].mxu0 %v279
  %v350 = vpop.f32.mrb[0].mxu0
  %v351 = vadd.f32 %v277, %v350
  %v352 = vpop.f32.mrb[0].mxu0
  %353 = vdwg.mxu0
  %vm354 = vcmask 7168
  %355 = vst.msk [vmem:[%s2] sm:$0xff] %vm354, %v351
  // Predicated region
  $region10: #{net_forward.1} parent=0 // pred_check
    _
  $region11: #{net_forward.1} parent=0 // pred_check_branch
    %357 = sbr.rel (0) target = $region13
  $region12: #{net_forward.1} parent=0 // pred_region
    _
  $region13: #{net_forward.1} parent=0 // pred_fallthru
    _
  // Predicated region
  $region14: #{net_forward.1} parent=0 // pred_check
    _
  $region15: #{net_forward.1} parent=0 // pred_check_branch
    %359 = sbr.rel (0) target = $region17
  $region16: #{net_forward.1} parent=0 // pred_region
    _
  $region17: #{net_forward.1} parent=0 // pred_fallthru
    _

</llo_original>
